<compile_context>
chip_gen: v7x
topology: tpu7x:2x2x1
jax: 0.10.0
libtpu: 0.0.40
codegen_flags: <defaults>
</compile_context>

<pallas_src>
import functools
import math

import jax
import jax.numpy as jnp
from jax.experimental import pallas as pl
from jax.experimental.pallas import tpu as pltpu


# ---------------------------------------------------------------------------
# Spectral normalization (parameter preprocessing, matches torch spectral_norm
# semantics with n_power_iterations=1, dim=0).
# ---------------------------------------------------------------------------
def _l2normalize(v, eps=1e-12):
    return v / jnp.maximum(jnp.linalg.norm(v), eps)


def spectral_normalize(w, u, n_iter=1, eps=1e-12):
    wm = w.reshape(w.shape[0], -1)
    v = _l2normalize(wm.T @ u, eps)
    for _ in range(n_iter - 1):
        u = _l2normalize(wm @ v, eps)
        v = _l2normalize(wm.T @ u, eps)
    u = _l2normalize(wm @ v, eps)
    sigma = jnp.dot(u, wm @ v)
    return w / sigma


def _lrelu(v):
    return jnp.where(v >= 0, v, 0.2 * v)


# ---------------------------------------------------------------------------
# Fused MLP kernel (conv already folded into w1 / bias row 0).
# Grid = (batch tiles, K tiles).  fc1 accumulates into acc_ref across K;
# everything downstream runs only on the last K step.
#   f_ref    : (TB, TK)            flattened input tile (batch b, K-slice k)
#   w1_ref   : (TK, dim_h)         conv-folded fc1 weight K-slice
#   bias_ref : (5, dim_h)          row0=b1', rows1-3=neck biases, row4=head bias
#   wn_ref   : (3, dh2, dh2)       neck weights (pre-transposed)
#   wh_ref   : (4*dh2, dh2)        spectral-normalized head weight (pre-transposed)
#   wo_ref   : (dh2, dim_o)        final linear (no bias), pre-transposed
#   o_ref    : (TB, dim_o)
#   acc_ref  : (TB, dim_h)         f32 fc1 accumulator (VMEM scratch)
# ---------------------------------------------------------------------------
def mlp_kernel(f_ref, w1_ref, bias_ref, wn_ref, wh_ref, wo_ref, o_ref, acc_ref,
               *, dh2):
    k = pl.program_id(1)

    @pl.when(k == 0)
    def _():
        acc_ref[...] = jnp.zeros_like(acc_ref)

    # fc1 (+ folded 1x1 conv): K-tiled MXU accumulation.
    acc_ref[...] += jnp.dot(f_ref[...].astype(jnp.float32), w1_ref[...],
                            preferred_element_type=jnp.float32)

    @pl.when(k == pl.num_programs(1) - 1)
    def _():
        bias = bias_ref[...]
        h = _lrelu(acc_ref[...] + bias[0:1, :])
        x0 = h[:, :dh2]
        cur = h[:, dh2:]

        # neck: 3 x (Linear + LeakyReLU), chained from the second half.
        chunks = [x0]
        for i in range(3):
            cur = _lrelu(jnp.dot(cur, wn_ref[i], preferred_element_type=jnp.float32)
                         + bias[i + 1:i + 2, :dh2])
            chunks.append(cur)

        # head: concat (one lane slab) -> single matmul -> LeakyReLU -> out.
        cat = jnp.concatenate(chunks, axis=1)                     # (TB, 4*dh2)
        z = _lrelu(jnp.dot(cat, wh_ref[...], preferred_element_type=jnp.float32)
                   + bias[4:5, :dh2])
        o_ref[...] = jnp.dot(z, wo_ref[...],
                             preferred_element_type=jnp.float32).astype(o_ref.dtype)


def _pick_batch_tile(B):
    # Batch tile: multiple of 8 that divides B (sublane friendly), else full B.
    for tb in (256, 128, 64, 32, 16, 8):
        if B % tb == 0:
            return tb
    return B


def _pick_k_tile(F_in, TB, dim_h, budget_bytes=24 << 20):
    # Per-K-step streamed VMEM (double-buffered f tile + w1 tile) must fit budget.
    max_tk = budget_bytes // (2 * 4 * (TB + dim_h))
    if F_in <= max_tk or F_in % 128 != 0:
        # Small enough (or not 128-divisible): single K step, full-K residency.
        return F_in
    best = 128
    k = 128
    while k <= min(F_in, max_tk):
        if F_in % k == 0:
            best = k
        k += 128
    return best


# ---------------------------------------------------------------------------
# Wrapper
# ---------------------------------------------------------------------------
def discriminator_head_forward(x, params):
    B, C_in, H, W = x.shape
    P = H * W
    dim_h = params["fc1_w"].shape[0]
    dh2 = dim_h // 2
    dim_o = params["out_w"].shape[0]

    # --- spectral-norm preprocessing (plain-JAX glue) ---
    wc = spectral_normalize(params["conv_w"], params["conv_u"]).reshape(-1, C_in)  # (C_out, C_in)
    bc = params["conv_b"]                                                          # (C_out,)
    wh = spectral_normalize(params["head_w"], params["head_u"]).T                  # (4*dh2, dh2)

    # --- fold 1x1 conv + channel-major flatten into fc1 (exact algebra) ---
    w1r = params["fc1_w"].reshape(dim_h, wc.shape[0], P)                 # (dim_h, C_out, P)
    w1_fold = jnp.einsum("oc,jop->cpj", wc, w1r).reshape(C_in * P, dim_h)
    b1_fold = params["fc1_b"] + jnp.einsum("jop,o->j", w1r, bc)

    # --- pack small parameters: one bias slab, one stacked neck-weight array ---
    bias = jnp.zeros((5, dim_h), jnp.float32)
    bias = bias.at[0].set(b1_fold)
    for i in range(3):
        bias = bias.at[i + 1, :dh2].set(params[f"neck{i}_b"])
    bias = bias.at[4, :dh2].set(params["head_b"])

    wn = jnp.stack([params[f"neck{i}_w"].T for i in range(3)], axis=0)   # (3, dh2, dh2)
    wo = params["out_w"].T                                               # (dh2, dim_o)

    # Flattened input straight into the kernel (no wrapper-side dtype-cast copy).
    F_in = C_in * P
    f = x.reshape(B, F_in)

    TB = _pick_batch_tile(B)
    TK = _pick_k_tile(F_in, TB, dim_h)
    grid = (B // TB, F_in // TK)

    # Explicit scoped-VMEM budget, kept well under v7x's 64 MiB physical VMEM.
    small_elems = 2 * (5 * dim_h + 3 * dh2 * dh2 + 4 * dh2 * dh2
                       + dh2 * max(dim_o, 128))
    stream_elems = 2 * (TB * TK + TK * dim_h)           # double-buffered f / w1 tiles
    io_elems = 2 * TB * max(dim_o, 128) + TB * dim_h    # output buffers + accumulator
    vmem_need = 4 * (small_elems + stream_elems + io_elems)
    vmem_limit = int(min(max(vmem_need + (4 << 20), 16 << 20), 48 << 20))

    out = pl.pallas_call(
        functools.partial(mlp_kernel, dh2=dh2),
        out_shape=jax.ShapeDtypeStruct((B, dim_o), jnp.float32),
        grid=grid,
        in_specs=[
            pl.BlockSpec((TB, TK), lambda b, k: (b, k)),
            pl.BlockSpec((TK, dim_h), lambda b, k: (k, 0)),
            pl.BlockSpec((5, dim_h), lambda b, k: (0, 0)),
            pl.BlockSpec((3, dh2, dh2), lambda b, k: (0, 0, 0)),
            pl.BlockSpec((4 * dh2, dh2), lambda b, k: (0, 0)),
            pl.BlockSpec((dh2, dim_o), lambda b, k: (0, 0)),
        ],
        out_specs=pl.BlockSpec((TB, dim_o), lambda b, k: (b, 0)),
        scratch_shapes=[pltpu.VMEM((TB, dim_h), jnp.float32)],
        compiler_params=pltpu.CompilerParams(
            dimension_semantics=("parallel", "arbitrary"),
            vmem_limit_bytes=vmem_limit,
        ),
    )(f, w1_fold, bias, wn, wh, wo)
    return out


# ---------------------------------------------------------------------------
# Pure-JAX reference (explicit conv path — gates the conv-into-fc1 fold)
# ---------------------------------------------------------------------------
def reference_forward(x, params):
    B, C_in, H, W = x.shape
    wc = spectral_normalize(params["conv_w"], params["conv_u"]).reshape(-1, C_in)
    y = jnp.einsum("oc,bchw->bohw", wc, x) + params["conv_b"][None, :, None, None]
    f = y.reshape(B, -1)
    h = _lrelu(f @ params["fc1_w"].T + params["fc1_b"])
    dh2 = h.shape[1] // 2
    xs = [h[:, :dh2]]
    cur = h[:, dh2:]
    for i in range(3):
        cur = _lrelu(cur @ params[f"neck{i}_w"].T + params[f"neck{i}_b"])
        xs.append(cur)
    cat = jnp.concatenate(xs, axis=1)
    wh = spectral_normalize(params["head_w"], params["head_u"])
    z = _lrelu(cat @ wh.T + params["head_b"])
    return z @ params["out_w"].T


# ---------------------------------------------------------------------------
def init_params(key, dim_in, dim_h, dim_o, H, W):
    dh2 = dim_h // 2
    F = dh2 * H * W
    keys = jax.random.split(key, 20)

    def lin_init(kw, kb, out_f, in_f):
        bound = 1.0 / math.sqrt(in_f)
        w = jax.random.uniform(kw, (out_f, in_f), jnp.float32, -bound, bound)
        b = jax.random.uniform(kb, (out_f,), jnp.float32, -bound, bound)
        return w, b

    p = {}
    cw, cb = lin_init(keys[0], keys[1], dh2, dim_in)
    p["conv_w"] = cw.reshape(dh2, dim_in, 1, 1)
    p["conv_b"] = cb
    p["conv_u"] = _l2normalize(jax.random.normal(keys[2], (dh2,), jnp.float32))
    p["fc1_w"], p["fc1_b"] = lin_init(keys[3], keys[4], dim_h, F)
    for i in range(3):
        p[f"neck{i}_w"], p[f"neck{i}_b"] = lin_init(keys[5 + 2 * i], keys[6 + 2 * i], dh2, dh2)
    p["head_w"], p["head_b"] = lin_init(keys[11], keys[12], dh2, 4 * dh2)
    p["head_u"] = _l2normalize(jax.random.normal(keys[13], (dh2,), jnp.float32))
    p["out_w"] = jax.random.uniform(keys[14], (dim_o, dh2), jnp.float32,
                                    -1.0 / math.sqrt(dh2), 1.0 / math.sqrt(dh2))
    return p


if __name__ == "__main__":
    B, dim_in, H, W = 2, 4, 16, 16
    dim_h, dim_o = 32, 1

    key = jax.random.PRNGKey(0)
    k_x, k_p = jax.random.split(key)
    x = jax.random.normal(k_x, (B, dim_in, H, W), jnp.float32)
    params = init_params(k_p, dim_in, dim_h, dim_o, H, W)

    out = discriminator_head_forward(x, params)
    out = jax.block_until_ready(out)

    ref = reference_forward(x, params)
    assert out.shape == (B, dim_o), out.shape
    assert jnp.allclose(out, ref, rtol=1e-4, atol=1e-4), (out, ref)
    print("KERNEL_OK")
</pallas_src>

<mosaic_0001>
module attributes {stable_mosaic.version = 11 : i64} {
  func.func @mlp_kernel(%arg0: i32, %arg1: i32, %arg2: memref<2x1024xf32, #tpu.memory_space<vmem>>, %arg3: memref<1024x32xf32, #tpu.memory_space<vmem>>, %arg4: memref<5x32xf32, #tpu.memory_space<vmem>>, %arg5: memref<3x16x16xf32, #tpu.memory_space<vmem>>, %arg6: memref<64x16xf32, #tpu.memory_space<vmem>>, %arg7: memref<16x1xf32, #tpu.memory_space<vmem>>, %arg8: memref<2x1xf32, #tpu.memory_space<vmem>>, %arg9: memref<2x32xf32, #tpu.memory_space<vmem>>) attributes {dimension_semantics = [#tpu.dimension_semantics<parallel>, #tpu.dimension_semantics<arbitrary>], iteration_bounds = array<i64: 1, 1>, scalar_prefetch = 0 : i64, scratch_operands = 1 : i64, tpu.core_type = #tpu.core_type<tc>, window_params = [{transform_indices = @transform_0, window_bounds = array<i64: 2, 1024>}, {transform_indices = @transform_1, window_bounds = array<i64: 1024, 32>}, {pipeline_mode = #tpu.pipeline_mode<synchronous>, transform_indices = @transform_2, window_bounds = array<i64: 5, 32>}, {pipeline_mode = #tpu.pipeline_mode<synchronous>, transform_indices = @transform_3, window_bounds = array<i64: 3, 16, 16>}, {pipeline_mode = #tpu.pipeline_mode<synchronous>, transform_indices = @transform_4, window_bounds = array<i64: 64, 16>}, {pipeline_mode = #tpu.pipeline_mode<synchronous>, transform_indices = @transform_5, window_bounds = array<i64: 16, 1>}, {transform_indices = @transform_6, window_bounds = array<i64: 2, 1>}]} {
    %c0_i32 = arith.constant 0 : i32
    %0 = arith.cmpi eq, %arg1, %c0_i32 : i32
    %1 = arith.extui %0 : i1 to i32
    %c0_i32_0 = arith.constant 0 : i32
    %2 = arith.cmpi ne, %1, %c0_i32_0 : i32
    scf.if %2 {
      %cst_10 = arith.constant 0.000000e+00 : f32
      %12 = vector.broadcast %cst_10 : f32 to vector<2x32xf32>
      %c0_11 = arith.constant 0 : index
      %c0_12 = arith.constant 0 : index
      %13 = vector.load %arg9[%c0_11, %c0_12] : memref<2x32xf32, #tpu.memory_space<vmem>>, vector<2x32xf32>
      tpu.vector_store %arg9[%c0_11, %c0_12], %12 {strides = array<i32>} : memref<2x32xf32, #tpu.memory_space<vmem>>, vector<2x32xf32>,
    } else {
    }
    %c0 = arith.constant 0 : index
    %c0_1 = arith.constant 0 : index
    %3 = vector.load %arg9[%c0, %c0_1] : memref<2x32xf32, #tpu.memory_space<vmem>>, vector<2x32xf32>
    %c0_2 = arith.constant 0 : index
    %c0_3 = arith.constant 0 : index
    %4 = vector.load %arg2[%c0_2, %c0_3] : memref<2x1024xf32, #tpu.memory_space<vmem>>, vector<2x1024xf32>
    %c0_4 = arith.constant 0 : index
    %c0_5 = arith.constant 0 : index
    %5 = vector.load %arg3[%c0_4, %c0_5] : memref<1024x32xf32, #tpu.memory_space<vmem>>, vector<1024x32xf32>
    %cst = arith.constant dense<0.000000e+00> : vector<2x32xf32>
    %6 = tpu.matmul %4, %5, %cst {dimension_numbers = #tpu.dot_dimension_numbers<[1], [0], [0], [1], [0, 0, 1, 1], [], []>} : vector<2x1024xf32>, vector<1024x32xf32>, vector<2x32xf32> -> vector<2x32xf32>
    %7 = arith.addf %3, %6 : vector<2x32xf32>
    %c0_6 = arith.constant 0 : index
    %c0_7 = arith.constant 0 : index
    %8 = vector.load %arg9[%c0_6, %c0_7] : memref<2x32xf32, #tpu.memory_space<vmem>>, vector<2x32xf32>
    tpu.vector_store %arg9[%c0_6, %c0_7], %7 {strides = array<i32>} : memref<2x32xf32, #tpu.memory_space<vmem>>, vector<2x32xf32>,
    %c0_i32_8 = arith.constant 0 : i32
    %9 = arith.cmpi eq, %arg1, %c0_i32_8 : i32
    %10 = arith.extui %9 : i1 to i32
    %c0_i32_9 = arith.constant 0 : i32
    %11 = arith.cmpi ne, %10, %c0_i32_9 : i32
    scf.if %11 {
      %c0_10 = arith.constant 0 : index
      %c0_11 = arith.constant 0 : index
      %12 = vector.load %arg4[%c0_10, %c0_11] : memref<5x32xf32, #tpu.memory_space<vmem>>, vector<5x32xf32>
      %c0_12 = arith.constant 0 : index
      %c0_13 = arith.constant 0 : index
      %13 = vector.load %arg9[%c0_12, %c0_13] : memref<2x32xf32, #tpu.memory_space<vmem>>, vector<2x32xf32>
      %14 = vector.extract_strided_slice %12 {offsets = [0, 0], sizes = [1, 32], strides = [1, 1]} : vector<5x32xf32> to vector<1x32xf32>
      %15 = vector.broadcast %14 : vector<1x32xf32> to vector<2x32xf32>
      %16 = arith.addf %13, %15 : vector<2x32xf32>
      %cst_14 = arith.constant 0.000000e+00 : f32
      %17 = vector.broadcast %cst_14 : f32 to vector<2x32xf32>
      %18 = arith.cmpf oge, %16, %17 : vector<2x32xf32>
      %cst_15 = arith.constant 2.000000e-01 : f32
      %19 = vector.broadcast %cst_15 : f32 to vector<2x32xf32>
      %20 = arith.mulf %19, %16 : vector<2x32xf32>
      %21 = arith.select %18, %16, %20 : vector<2x32xi1>, vector<2x32xf32>
      %22 = vector.extract_strided_slice %21 {offsets = [0, 0], sizes = [2, 16], strides = [1, 1]} : vector<2x32xf32> to vector<2x16xf32>
      %23 = vector.extract_strided_slice %21 {offsets = [0, 16], sizes = [2, 16], strides = [1, 1]} : vector<2x32xf32> to vector<2x16xf32>
      %c0_16 = arith.constant 0 : index
      %c0_17 = arith.constant 0 : index
      %c0_18 = arith.constant 0 : index
      %24 = vector.load %arg5[%c0_16, %c0_17, %c0_18] : memref<3x16x16xf32, #tpu.memory_space<vmem>>, vector<1x16x16xf32>
      %25 = vector.shape_cast %24 : vector<1x16x16xf32> to vector<16x16xf32>
      %cst_19 = arith.constant dense<0.000000e+00> : vector<2x16xf32>
      %26 = tpu.matmul %23, %25, %cst_19 {dimension_numbers = #tpu.dot_dimension_numbers<[1], [0], [0], [1], [0, 0, 1, 1], [], []>} : vector<2x16xf32>, vector<16x16xf32>, vector<2x16xf32> -> vector<2x16xf32>
      %27 = vector.extract_strided_slice %12 {offsets = [1, 0], sizes = [1, 16], strides = [1, 1]} : vector<5x32xf32> to vector<1x16xf32>
      %28 = vector.broadcast %27 : vector<1x16xf32> to vector<2x16xf32>
      %29 = arith.addf %26, %28 : vector<2x16xf32>
      %cst_20 = arith.constant 0.000000e+00 : f32
      %30 = vector.broadcast %cst_20 : f32 to vector<2x16xf32>
      %31 = arith.cmpf oge, %29, %30 : vector<2x16xf32>
      %cst_21 = arith.constant 2.000000e-01 : f32
      %32 = vector.broadcast %cst_21 : f32 to vector<2x16xf32>
      %33 = arith.mulf %32, %29 : vector<2x16xf32>
      %34 = arith.select %31, %29, %33 : vector<2x16xi1>, vector<2x16xf32>
      %c1 = arith.constant 1 : index
      %c0_22 = arith.constant 0 : index
      %c0_23 = arith.constant 0 : index
      %35 = vector.load %arg5[%c1, %c0_22, %c0_23] : memref<3x16x16xf32, #tpu.memory_space<vmem>>, vector<1x16x16xf32>
      %36 = vector.shape_cast %35 : vector<1x16x16xf32> to vector<16x16xf32>
      %cst_24 = arith.constant dense<0.000000e+00> : vector<2x16xf32>
      %37 = tpu.matmul %34, %36, %cst_24 {dimension_numbers = #tpu.dot_dimension_numbers<[1], [0], [0], [1], [0, 0, 1, 1], [], []>} : vector<2x16xf32>, vector<16x16xf32>, vector<2x16xf32> -> vector<2x16xf32>
      %38 = vector.extract_strided_slice %12 {offsets = [2, 0], sizes = [1, 16], strides = [1, 1]} : vector<5x32xf32> to vector<1x16xf32>
      %39 = vector.broadcast %38 : vector<1x16xf32> to vector<2x16xf32>
      %40 = arith.addf %37, %39 : vector<2x16xf32>
      %cst_25 = arith.constant 0.000000e+00 : f32
      %41 = vector.broadcast %cst_25 : f32 to vector<2x16xf32>
      %42 = arith.cmpf oge, %40, %41 : vector<2x16xf32>
      %cst_26 = arith.constant 2.000000e-01 : f32
      %43 = vector.broadcast %cst_26 : f32 to vector<2x16xf32>
      %44 = arith.mulf %43, %40 : vector<2x16xf32>
      %45 = arith.select %42, %40, %44 : vector<2x16xi1>, vector<2x16xf32>
      %c2 = arith.constant 2 : index
      %c0_27 = arith.constant 0 : index
      %c0_28 = arith.constant 0 : index
      %46 = vector.load %arg5[%c2, %c0_27, %c0_28] : memref<3x16x16xf32, #tpu.memory_space<vmem>>, vector<1x16x16xf32>
      %47 = vector.shape_cast %46 : vector<1x16x16xf32> to vector<16x16xf32>
      %cst_29 = arith.constant dense<0.000000e+00> : vector<2x16xf32>
      %48 = tpu.matmul %45, %47, %cst_29 {dimension_numbers = #tpu.dot_dimension_numbers<[1], [0], [0], [1], [0, 0, 1, 1], [], []>} : vector<2x16xf32>, vector<16x16xf32>, vector<2x16xf32> -> vector<2x16xf32>
      %49 = vector.extract_strided_slice %12 {offsets = [3, 0], sizes = [1, 16], strides = [1, 1]} : vector<5x32xf32> to vector<1x16xf32>
      %50 = vector.broadcast %49 : vector<1x16xf32> to vector<2x16xf32>
      %51 = arith.addf %48, %50 : vector<2x16xf32>
      %cst_30 = arith.constant 0.000000e+00 : f32
      %52 = vector.broadcast %cst_30 : f32 to vector<2x16xf32>
      %53 = arith.cmpf oge, %51, %52 : vector<2x16xf32>
      %cst_31 = arith.constant 2.000000e-01 : f32
      %54 = vector.broadcast %cst_31 : f32 to vector<2x16xf32>
      %55 = arith.mulf %54, %51 : vector<2x16xf32>
      %56 = arith.select %53, %51, %55 : vector<2x16xi1>, vector<2x16xf32>
      %57 = tpu.concatenate %22, %34, %45, %56 in 1 : vector<2x16xf32>, vector<2x16xf32>, vector<2x16xf32>, vector<2x16xf32> -> vector<2x64xf32>
      %c0_32 = arith.constant 0 : index
      %c0_33 = arith.constant 0 : index
      %58 = vector.load %arg6[%c0_32, %c0_33] : memref<64x16xf32, #tpu.memory_space<vmem>>, vector<64x16xf32>
      %cst_34 = arith.constant dense<0.000000e+00> : vector<2x16xf32>
      %59 = tpu.matmul %57, %58, %cst_34 {dimension_numbers = #tpu.dot_dimension_numbers<[1], [0], [0], [1], [0, 0, 1, 1], [], []>} : vector<2x64xf32>, vector<64x16xf32>, vector<2x16xf32> -> vector<2x16xf32>
      %60 = vector.extract_strided_slice %12 {offsets = [4, 0], sizes = [1, 16], strides = [1, 1]} : vector<5x32xf32> to vector<1x16xf32>
      %61 = vector.broadcast %60 : vector<1x16xf32> to vector<2x16xf32>
      %62 = arith.addf %59, %61 : vector<2x16xf32>
      %cst_35 = arith.constant 0.000000e+00 : f32
      %63 = vector.broadcast %cst_35 : f32 to vector<2x16xf32>
      %64 = arith.cmpf oge, %62, %63 : vector<2x16xf32>
      %cst_36 = arith.constant 2.000000e-01 : f32
      %65 = vector.broadcast %cst_36 : f32 to vector<2x16xf32>
      %66 = arith.mulf %65, %62 : vector<2x16xf32>
      %67 = arith.select %64, %62, %66 : vector<2x16xi1>, vector<2x16xf32>
      %c0_37 = arith.constant 0 : index
      %c0_38 = arith.constant 0 : index
      %68 = vector.load %arg7[%c0_37, %c0_38] : memref<16x1xf32, #tpu.memory_space<vmem>>, vector<16x1xf32>
      %cst_39 = arith.constant dense<0.000000e+00> : vector<2x1xf32>
      %69 = tpu.matmul %67, %68, %cst_39 {dimension_numbers = #tpu.dot_dimension_numbers<[1], [0], [0], [1], [0, 0, 1, 1], [], []>} : vector<2x16xf32>, vector<16x1xf32>, vector<2x1xf32> -> vector<2x1xf32>
      %c0_40 = arith.constant 0 : index
      %c0_41 = arith.constant 0 : index
      %70 = vector.load %arg8[%c0_40, %c0_41] : memref<2x1xf32, #tpu.memory_space<vmem>>, vector<2x1xf32>
      tpu.vector_store %arg8[%c0_40, %c0_41], %69 {strides = array<i32>} : memref<2x1xf32, #tpu.memory_space<vmem>>, vector<2x1xf32>,
    } else {
    }
    return
  }
  func.func @transform_0(%arg0: i32, %arg1: i32) -> (i32, i32) {
    %c0_i32 = arith.constant 0 : i32
    return %arg0, %arg1 : i32, i32
  }
  func.func @transform_1(%arg0: i32, %arg1: i32) -> (i32, i32) {
    %c0_i32 = arith.constant 0 : i32
    %c0_i32_0 = arith.constant 0 : i32
    return %arg1, %c0_i32 : i32, i32
  }
  func.func @transform_2(%arg0: i32, %arg1: i32) -> (i32, i32) {
    %c0_i32 = arith.constant 0 : i32
    %c0_i32_0 = arith.constant 0 : i32
    %c0_i32_1 = arith.constant 0 : i32
    return %c0_i32, %c0_i32_0 : i32, i32
  }
  func.func @transform_3(%arg0: i32, %arg1: i32) -> (i32, i32, i32) {
    %c0_i32 = arith.constant 0 : i32
    %c0_i32_0 = arith.constant 0 : i32
    %c0_i32_1 = arith.constant 0 : i32
    %c0_i32_2 = arith.constant 0 : i32
    return %c0_i32, %c0_i32_0, %c0_i32_1 : i32, i32, i32
  }
  func.func @transform_4(%arg0: i32, %arg1: i32) -> (i32, i32) {
    %c0_i32 = arith.constant 0 : i32
    %c0_i32_0 = arith.constant 0 : i32
    %c0_i32_1 = arith.constant 0 : i32
    return %c0_i32, %c0_i32_0 : i32, i32
  }
  func.func @transform_5(%arg0: i32, %arg1: i32) -> (i32, i32) {
    %c0_i32 = arith.constant 0 : i32
    %c0_i32_0 = arith.constant 0 : i32
    %c0_i32_1 = arith.constant 0 : i32
    return %c0_i32, %c0_i32_0 : i32, i32
  }
  func.func @transform_6(%arg0: i32, %arg1: i32) -> (i32, i32) {
    %c0_i32 = arith.constant 0 : i32
    %c0_i32_0 = arith.constant 0 : i32
    return %arg0, %c0_i32 : i32, i32
  }
}

</mosaic_0001>

<llo_original>
// kernel: tpu_custom_call.1
$region0: #{tpu_custom_call.1}
  #allocation0 [shape = 'u32[]', space=smem, size = 0x4, offset = 0x4, fixed_abs, tag = 'smem constant byte address 0x4 - core index']
  #allocation1 [shape = 'u32[144,128]{1,0:T(1,128)}', space=vmem, size = 0x12000, scoped, tag = 'internal scratch']
  #allocation2 [shape = 'f32[2,32]{1,0:T(2,128)}', space=vmem, size = 0x400, scoped, tag = 'scratch operand']
  %s0 = inlined_call_operand.vmem [shape: f32[2,1024], index: 0, kind: input, shape index: {}]
  %s1 = inlined_call_operand.vmem [shape: f32[1024,32], index: 1, kind: input, shape index: {}]
  %s2 = inlined_call_operand.vmem [shape: f32[5,32], index: 2, kind: input, shape index: {}]
  %s3 = inlined_call_operand.vmem [shape: f32[3,16,16], index: 3, kind: input, shape index: {}]
  %s4 = inlined_call_operand.vmem [shape: f32[64,16], index: 4, kind: input, shape index: {}]
  %s5 = inlined_call_operand.vmem [shape: f32[16,1], index: 5, kind: input, shape index: {}]
  %s6 = inlined_call_operand.vmem [shape: f32[2,1], index: 6, kind: output, shape index: {}]
  %s7 = sld [smem:[#allocation0]]
  $region42: #{tpu_custom_call.1} parent=0
    _
  %s9 = ssub.s32 1, %s7
  %s10 = scalar_select 0, %s9, %s7
  // Predicated region
  $region2: #{tpu_custom_call.1} parent=0 // pred_check
    _
  $region3: #{tpu_custom_call.1} parent=0 // pred_check_branch
    %12 = sbr.rel (0) target = $region5
  $region4: #{tpu_custom_call.1} parent=0 // pred_region
    _
  $region5: #{tpu_custom_call.1} parent=0 // pred_fallthru
    _
  // Predicated region
  $region6: #{tpu_custom_call.1} parent=0 // pred_check
    _
  $region7: #{tpu_custom_call.1} parent=0 // pred_check_branch
    %14 = sbr.rel (0) target = $region9
  $region8: #{tpu_custom_call.1} parent=0 // pred_region
    _
  $region9: #{tpu_custom_call.1} parent=0 // pred_fallthru
    _
  // Predicated region
  $region10: #{tpu_custom_call.1} parent=0 // pred_check
    _
  $region11: #{tpu_custom_call.1} parent=0 // pred_check_branch
    %16 = sbr.rel (0) target = $region13
  $region12: #{tpu_custom_call.1} parent=0 // pred_region
    _
  $region13: #{tpu_custom_call.1} parent=0 // pred_fallthru
    _
  // Predicated region
  $region14: #{tpu_custom_call.1} parent=0 // pred_check
    _
  $region15: #{tpu_custom_call.1} parent=0 // pred_check_branch
    %18 = sbr.rel (0) target = $region17
  $region16: #{tpu_custom_call.1} parent=0 // pred_region
    _
  $region17: #{tpu_custom_call.1} parent=0 // pred_fallthru
    _
  // Predicated region
  $region18: #{tpu_custom_call.1} parent=0 // pred_check
    _
  $region19: #{tpu_custom_call.1} parent=0 // pred_check_branch
    %20 = sbr.rel (0) target = $region21
  $region20: #{tpu_custom_call.1} parent=0 // pred_region
    _
  $region21: #{tpu_custom_call.1} parent=0 // pred_fallthru
    _
  // Predicated region
  $region22: #{tpu_custom_call.1} parent=0 // pred_check
    _
  $region23: #{tpu_custom_call.1} parent=0 // pred_check_branch
    %22 = sbr.rel (0) target = $region25
  $region24: #{tpu_custom_call.1} parent=0 // pred_region
    _
  $region25: #{tpu_custom_call.1} parent=0 // pred_fallthru
    _
  %p23 = scmp.eq.s32.totalorder 0, 0
  // Predicated region
  $region26: #{tpu_custom_call.1} parent=0 // pred_check
    %p24 = pneg %p23
  $region27: #{tpu_custom_call.1} parent=0 // pred_check_branch
    %26 = sbr.rel (%p24) target = $region29
  $region28: #{tpu_custom_call.1} parent=0 // pred_region
    %vm27 = vcmask 254976
    %28 = vst.msk [vmem:[#allocation2] sm:$0x3] %vm27, 0.0
  $region29: #{tpu_custom_call.1} parent=0 // pred_fallthru
    _
  %v29 = vld [vmem:[#allocation2] sm:$0x3]
  %v30 = vld [vmem:[%s0] sm:$0xff]
  %v31 = vld [vmem:[%s0 + $0x8] sm:$0xff]
  %v32 = vld [vmem:[%s1] sm:$0xff]
  %v33 = vld [vmem:[%s1 + $0x8] sm:$0xff]
  %v34 = vld [vmem:[%s1 + $0x10] sm:$0xff]
  %v35 = vld [vmem:[%s1 + $0x18] sm:$0xff]
  %v36 = vld [vmem:[%s1 + $0x20] sm:$0xff]
  %v37 = vld [vmem:[%s1 + $0x28] sm:$0xff]
  %v38 = vld [vmem:[%s1 + $0x30] sm:$0xff]
  %v39 = vld [vmem:[%s1 + $0x38] sm:$0xff]
  %v40 = vld [vmem:[%s1 + $0x40] sm:$0xff]
  %v41 = vld [vmem:[%s1 + $0x48] sm:$0xff]
  %v42 = vld [vmem:[%s1 + $0x50] sm:$0xff]
  %v43 = vld [vmem:[%s1 + $0x58] sm:$0xff]
  %v44 = vld [vmem:[%s1 + $0x60] sm:$0xff]
  %v45 = vld [vmem:[%s1 + $0x68] sm:$0xff]
  %v46 = vld [vmem:[%s1 + $0x70] sm:$0xff]
  %v47 = vld [vmem:[%s1 + $0x78] sm:$0xff]
  %v48 = vld [vmem:[%s1 + $0x80] sm:$0xff]
  %v49 = vld [vmem:[%s1 + $0x88] sm:$0xff]
  %v50 = vld [vmem:[%s1 + $0x90] sm:$0xff]
  %v51 = vld [vmem:[%s1 + $0x98] sm:$0xff]
  %v52 = vld [vmem:[%s1 + $0xa0] sm:$0xff]
  %v53 = vld [vmem:[%s1 + $0xa8] sm:$0xff]
  %v54 = vld [vmem:[%s1 + $0xb0] sm:$0xff]
  %v55 = vld [vmem:[%s1 + $0xb8] sm:$0xff]
  %v56 = vld [vmem:[%s1 + $0xc0] sm:$0xff]
  %v57 = vld [vmem:[%s1 + $0xc8] sm:$0xff]
  %v58 = vld [vmem:[%s1 + $0xd0] sm:$0xff]
  %v59 = vld [vmem:[%s1 + $0xd8] sm:$0xff]
  %v60 = vld [vmem:[%s1 + $0xe0] sm:$0xff]
  %v61 = vld [vmem:[%s1 + $0xe8] sm:$0xff]
  %v62 = vld [vmem:[%s1 + $0xf0] sm:$0xff]
  %v63 = vld [vmem:[%s1 + $0xf8] sm:$0xff]
  %v64 = vld [vmem:[%s1 + $0x100] sm:$0xff]
  %v65 = vld [vmem:[%s1 + $0x108] sm:$0xff]
  %v66 = vld [vmem:[%s1 + $0x110] sm:$0xff]
  %v67 = vld [vmem:[%s1 + $0x118] sm:$0xff]
  %v68 = vld [vmem:[%s1 + $0x120] sm:$0xff]
  %v69 = vld [vmem:[%s1 + $0x128] sm:$0xff]
  %v70 = vld [vmem:[%s1 + $0x130] sm:$0xff]
  %v71 = vld [vmem:[%s1 + $0x138] sm:$0xff]
  %v72 = vld [vmem:[%s1 + $0x140] sm:$0xff]
  %v73 = vld [vmem:[%s1 + $0x148] sm:$0xff]
  %v74 = vld [vmem:[%s1 + $0x150] sm:$0xff]
  %v75 = vld [vmem:[%s1 + $0x158] sm:$0xff]
  %v76 = vld [vmem:[%s1 + $0x160] sm:$0xff]
  %v77 = vld [vmem:[%s1 + $0x168] sm:$0xff]
  %v78 = vld [vmem:[%s1 + $0x170] sm:$0xff]
  %v79 = vld [vmem:[%s1 + $0x178] sm:$0xff]
  %v80 = vld [vmem:[%s1 + $0x180] sm:$0xff]
  %v81 = vld [vmem:[%s1 + $0x188] sm:$0xff]
  %v82 = vld [vmem:[%s1 + $0x190] sm:$0xff]
  %v83 = vld [vmem:[%s1 + $0x198] sm:$0xff]
  %v84 = vld [vmem:[%s1 + $0x1a0] sm:$0xff]
  %v85 = vld [vmem:[%s1 + $0x1a8] sm:$0xff]
  %v86 = vld [vmem:[%s1 + $0x1b0] sm:$0xff]
  %v87 = vld [vmem:[%s1 + $0x1b8] sm:$0xff]
  %v88 = vld [vmem:[%s1 + $0x1c0] sm:$0xff]
  %v89 = vld [vmem:[%s1 + $0x1c8] sm:$0xff]
  %v90 = vld [vmem:[%s1 + $0x1d0] sm:$0xff]
  %v91 = vld [vmem:[%s1 + $0x1d8] sm:$0xff]
  %v92 = vld [vmem:[%s1 + $0x1e0] sm:$0xff]
  %v93 = vld [vmem:[%s1 + $0x1e8] sm:$0xff]
  %v94 = vld [vmem:[%s1 + $0x1f0] sm:$0xff]
  %v95 = vld [vmem:[%s1 + $0x1f8] sm:$0xff]
  %v96 = vld [vmem:[%s1 + $0x200] sm:$0xff]
  %v97 = vld [vmem:[%s1 + $0x208] sm:$0xff]
  %v98 = vld [vmem:[%s1 + $0x210] sm:$0xff]
  %v99 = vld [vmem:[%s1 + $0x218] sm:$0xff]
  %v100 = vld [vmem:[%s1 + $0x220] sm:$0xff]
  %v101 = vld [vmem:[%s1 + $0x228] sm:$0xff]
  %v102 = vld [vmem:[%s1 + $0x230] sm:$0xff]
  %v103 = vld [vmem:[%s1 + $0x238] sm:$0xff]
  %v104 = vld [vmem:[%s1 + $0x240] sm:$0xff]
  %v105 = vld [vmem:[%s1 + $0x248] sm:$0xff]
  %v106 = vld [vmem:[%s1 + $0x250] sm:$0xff]
  %v107 = vld [vmem:[%s1 + $0x258] sm:$0xff]
  %v108 = vld [vmem:[%s1 + $0x260] sm:$0xff]
  %v109 = vld [vmem:[%s1 + $0x268] sm:$0xff]
  %v110 = vld [vmem:[%s1 + $0x270] sm:$0xff]
  %v111 = vld [vmem:[%s1 + $0x278] sm:$0xff]
  %v112 = vld [vmem:[%s1 + $0x280] sm:$0xff]
  %v113 = vld [vmem:[%s1 + $0x288] sm:$0xff]
  %v114 = vld [vmem:[%s1 + $0x290] sm:$0xff]
  %v115 = vld [vmem:[%s1 + $0x298] sm:$0xff]
  %v116 = vld [vmem:[%s1 + $0x2a0] sm:$0xff]
  %v117 = vld [vmem:[%s1 + $0x2a8] sm:$0xff]
  %v118 = vld [vmem:[%s1 + $0x2b0] sm:$0xff]
  %v119 = vld [vmem:[%s1 + $0x2b8] sm:$0xff]
  %v120 = vld [vmem:[%s1 + $0x2c0] sm:$0xff]
  %v121 = vld [vmem:[%s1 + $0x2c8] sm:$0xff]
  %v122 = vld [vmem:[%s1 + $0x2d0] sm:$0xff]
  %v123 = vld [vmem:[%s1 + $0x2d8] sm:$0xff]
  %v124 = vld [vmem:[%s1 + $0x2e0] sm:$0xff]
  %v125 = vld [vmem:[%s1 + $0x2e8] sm:$0xff]
  %v126 = vld [vmem:[%s1 + $0x2f0] sm:$0xff]
  %v127 = vld [vmem:[%s1 + $0x2f8] sm:$0xff]
  %v128 = vld [vmem:[%s1 + $0x300] sm:$0xff]
  %v129 = vld [vmem:[%s1 + $0x308] sm:$0xff]
  %v130 = vld [vmem:[%s1 + $0x310] sm:$0xff]
  %v131 = vld [vmem:[%s1 + $0x318] sm:$0xff]
  %v132 = vld [vmem:[%s1 + $0x320] sm:$0xff]
  %v133 = vld [vmem:[%s1 + $0x328] sm:$0xff]
  %v134 = vld [vmem:[%s1 + $0x330] sm:$0xff]
  %v135 = vld [vmem:[%s1 + $0x338] sm:$0xff]
  %v136 = vld [vmem:[%s1 + $0x340] sm:$0xff]
  %v137 = vld [vmem:[%s1 + $0x348] sm:$0xff]
  %v138 = vld [vmem:[%s1 + $0x350] sm:$0xff]
  %v139 = vld [vmem:[%s1 + $0x358] sm:$0xff]
  %v140 = vld [vmem:[%s1 + $0x360] sm:$0xff]
  %v141 = vld [vmem:[%s1 + $0x368] sm:$0xff]
  %v142 = vld [vmem:[%s1 + $0x370] sm:$0xff]
  %v143 = vld [vmem:[%s1 + $0x378] sm:$0xff]
  %v144 = vld [vmem:[%s1 + $0x380] sm:$0xff]
  %v145 = vld [vmem:[%s1 + $0x388] sm:$0xff]
  %v146 = vld [vmem:[%s1 + $0x390] sm:$0xff]
  %v147 = vld [vmem:[%s1 + $0x398] sm:$0xff]
  %v148 = vld [vmem:[%s1 + $0x3a0] sm:$0xff]
  %v149 = vld [vmem:[%s1 + $0x3a8] sm:$0xff]
  %v150 = vld [vmem:[%s1 + $0x3b0] sm:$0xff]
  %v151 = vld [vmem:[%s1 + $0x3b8] sm:$0xff]
  %v152 = vld [vmem:[%s1 + $0x3c0] sm:$0xff]
  %v153 = vld [vmem:[%s1 + $0x3c8] sm:$0xff]
  %v154 = vld [vmem:[%s1 + $0x3d0] sm:$0xff]
  %v155 = vld [vmem:[%s1 + $0x3d8] sm:$0xff]
  %v156 = vld [vmem:[%s1 + $0x3e0] sm:$0xff]
  %v157 = vld [vmem:[%s1 + $0x3e8] sm:$0xff]
  %v158 = vld [vmem:[%s1 + $0x3f0] sm:$0xff]
  %v159 = vld [vmem:[%s1 + $0x3f8] sm:$0xff]
  %v162 = vcombine.high %v30, %v30
  %v164 = vunpack.c.l.s4 1983009808
  %v165 = vunpack.c.0.s8 %v164
  %v166 = vlaneseq
  %v167 = vshrl.u32 %v166, 7
  %v168 = vsub.s32 %v165, %v167
  %v169 = vrot.slane %v30, %v168
  %v171 = vunpack.c.l.s4 1983009808
  %v172 = vunpack.c.0.s8 %v171
  %v173 = vlaneseq
  %v174 = vshrl.u32 %v173, 7
  %v175 = vsub.s32 %v172, %v174
  %v176 = vrot.slane %v162, %v175
  %v177 = vcombine.high %v169, %v169
  %v178 = vcombine.high %v176, %v176
  %v179 = vcombine.high %v31, %v31
  %v181 = vunpack.c.l.s4 1983009808
  %v182 = vunpack.c.0.s8 %v181
  %v183 = vlaneseq
  %v184 = vshrl.u32 %v183, 7
  %v185 = vsub.s32 %v182, %v184
  %v186 = vrot.slane %v31, %v185
  %v188 = vunpack.c.l.s4 1983009808
  %v189 = vunpack.c.0.s8 %v188
  %v190 = vlaneseq
  %v191 = vshrl.u32 %v190, 7
  %v192 = vsub.s32 %v189, %v191
  %v193 = vrot.slane %v179, %v192
  %v194 = vcombine.high %v186, %v186
  %v195 = vcombine.high %v193, %v193
  %204 = vmatprep.subr.mxu0 0.0
  %205 = vmatpush1.msra.mxu0 %v32
  %206 = vmatprep.subr.mxu0 0.0
  %207 = vmatpush1.msra.mxu0 %v33
  %208 = vmatprep.subr.mxu0 0.0
  %209 = vmatpush1.msra.mxu0 %v34
  %210 = vmatprep.subr.mxu0 0.0
  %211 = vmatpush1.msra.mxu0 %v35
  %212 = vmatprep.subr.mxu0 0.0
  %213 = vmatpush1.msra.mxu0 %v36
  %214 = vmatprep.subr.mxu0 0.0
  %215 = vmatpush1.msra.mxu0 %v37
  %216 = vmatprep.subr.mxu0 0.0
  %217 = vmatpush1.msra.mxu0 %v38
  %218 = vmatprep.subr.mxu0 0.0
  %219 = vmatpush1.msra.mxu0 %v39
  %220 = vmatprep.subr.mxu0 0.0
  %221 = vmatpush1.msra.mxu0 %v40
  %222 = vmatprep.subr.mxu0 0.0
  %223 = vmatpush1.msra.mxu0 %v41
  %224 = vmatprep.subr.mxu0 0.0
  %225 = vmatpush1.msra.mxu0 %v42
  %226 = vmatprep.subr.mxu0 0.0
  %227 = vmatpush1.msra.mxu0 %v43
  %228 = vmatprep.subr.mxu0 0.0
  %229 = vmatpush1.msra.mxu0 %v44
  %230 = vmatprep.subr.mxu0 0.0
  %231 = vmatpush1.msra.mxu0 %v45
  %232 = vmatprep.subr.mxu0 0.0
  %233 = vmatpush1.msra.mxu0 %v46
  %234 = vmatprep.subr.mxu0 0.0
  %235 = vmatpush1.msra.mxu0 %v47
  %236 = vmatprep.subr.mxu0 0.0
  %237 = vmatpush1.msra.mxu0 %v48
  %238 = vmatprep.subr.mxu0 0.0
  %239 = vmatpush1.msra.mxu0 %v49
  %240 = vmatprep.subr.mxu0 0.0
  %241 = vmatpush1.msra.mxu0 %v50
  %242 = vmatprep.subr.mxu0 0.0
  %243 = vmatpush1.msra.mxu0 %v51
  %244 = vmatprep.subr.mxu0 0.0
  %245 = vmatpush1.msra.mxu0 %v52
  %246 = vmatprep.subr.mxu0 0.0
  %247 = vmatpush1.msra.mxu0 %v53
  %248 = vmatprep.subr.mxu0 0.0
  %249 = vmatpush1.msra.mxu0 %v54
  %250 = vmatprep.subr.mxu0 0.0
  %251 = vmatpush1.msra.mxu0 %v55
  %252 = vmatprep.subr.mxu0 0.0
  %253 = vmatpush1.msra.mxu0 %v56
  %254 = vmatprep.subr.mxu0 0.0
  %255 = vmatpush1.msra.mxu0 %v57
  %256 = vmatprep.subr.mxu0 0.0
  %257 = vmatpush1.msra.mxu0 %v58
  %258 = vmatprep.subr.mxu0 0.0
  %259 = vmatpush1.msra.mxu0 %v59
  %260 = vmatprep.subr.mxu0 0.0
  %261 = vmatpush1.msra.mxu0 %v60
  %262 = vmatprep.subr.mxu0 0.0
  %263 = vmatpush1.msra.mxu0 %v61
  %264 = vmatprep.subr.mxu0 0.0
  %265 = vmatpush1.msra.mxu0 %v62
  %266 = vmatprep.subr.mxu0 0.0
  %267 = vmatpush1.msra.mxu0 %v63
  %268 = vmatprep.mubr.f32.mxu0 %v177
  %269 = vmatmul.mubr.f32.gmra.mrb[0].mxu0 %v169
  %v270 = vpop.f32.mrb[0].mxu0
  %v271 = vadd.f32 0.0, %v270
  %v272 = vpop.f32.mrb[0].mxu0
  %273 = vdwg.mxu0
  %274 = vmatprep.subr.mxu0 0.0
  %275 = vmatpush1.msra.mxu0 %v64
  %276 = vmatprep.subr.mxu0 0.0
  %277 = vmatpush1.msra.mxu0 %v65
  %278 = vmatprep.subr.mxu0 0.0
  %279 = vmatpush1.msra.mxu0 %v66
  %280 = vmatprep.subr.mxu0 0.0
  %281 = vmatpush1.msra.mxu0 %v67
  %282 = vmatprep.subr.mxu0 0.0
  %283 = vmatpush1.msra.mxu0 %v68
  %284 = vmatprep.subr.mxu0 0.0
  %285 = vmatpush1.msra.mxu0 %v69
  %286 = vmatprep.subr.mxu0 0.0
  %287 = vmatpush1.msra.mxu0 %v70
  %288 = vmatprep.subr.mxu0 0.0
  %289 = vmatpush1.msra.mxu0 %v71
  %290 = vmatprep.subr.mxu0 0.0
  %291 = vmatpush1.msra.mxu0 %v72
  %292 = vmatprep.subr.mxu0 0.0
  %293 = vmatpush1.msra.mxu0 %v73
  %294 = vmatprep.subr.mxu0 0.0
  %295 = vmatpush1.msra.mxu0 %v74
  %296 = vmatprep.subr.mxu0 0.0
  %297 = vmatpush1.msra.mxu0 %v75
  %298 = vmatprep.subr.mxu0 0.0
  %299 = vmatpush1.msra.mxu0 %v76
  %300 = vmatprep.subr.mxu0 0.0
  %301 = vmatpush1.msra.mxu0 %v77
  %302 = vmatprep.subr.mxu0 0.0
  %303 = vmatpush1.msra.mxu0 %v78
  %304 = vmatprep.subr.mxu0 0.0
  %305 = vmatpush1.msra.mxu0 %v79
  %306 = vmatprep.subr.mxu0 0.0
  %307 = vmatpush1.msra.mxu0 %v80
  %308 = vmatprep.subr.mxu0 0.0
  %309 = vmatpush1.msra.mxu0 %v81
  %310 = vmatprep.subr.mxu0 0.0
  %311 = vmatpush1.msra.mxu0 %v82
  %312 = vmatprep.subr.mxu0 0.0
  %313 = vmatpush1.msra.mxu0 %v83
  %314 = vmatprep.subr.mxu0 0.0
  %315 = vmatpush1.msra.mxu0 %v84
  %316 = vmatprep.subr.mxu0 0.0
  %317 = vmatpush1.msra.mxu0 %v85
  %318 = vmatprep.subr.mxu0 0.0
  %319 = vmatpush1.msra.mxu0 %v86
  %320 = vmatprep.subr.mxu0 0.0
  %321 = vmatpush1.msra.mxu0 %v87
  %322 = vmatprep.subr.mxu0 0.0
  %323 = vmatpush1.msra.mxu0 %v88
  %324 = vmatprep.subr.mxu0 0.0
  %325 = vmatpush1.msra.mxu0 %v89
  %326 = vmatprep.subr.mxu0 0.0
  %327 = vmatpush1.msra.mxu0 %v90
  %328 = vmatprep.subr.mxu0 0.0
  %329 = vmatpush1.msra.mxu0 %v91
  %330 = vmatprep.subr.mxu0 0.0
  %331 = vmatpush1.msra.mxu0 %v92
  %332 = vmatprep.subr.mxu0 0.0
  %333 = vmatpush1.msra.mxu0 %v93
  %334 = vmatprep.subr.mxu0 0.0
  %335 = vmatpush1.msra.mxu0 %v94
  %336 = vmatprep.subr.mxu0 0.0
  %337 = vmatpush1.msra.mxu0 %v95
  %338 = vmatprep.mubr.f32.mxu0 %v178
  %339 = vmatmul.mubr.f32.gmra.mrb[0].mxu0 %v176
  %v340 = vpop.f32.mrb[0].mxu0
  %v341 = vadd.f32 %v271, %v340
  %v342 = vpop.f32.mrb[0].mxu0
  %343 = vdwg.mxu0
  %344 = vmatprep.subr.mxu0 0.0
  %345 = vmatpush1.msra.mxu0 %v96
  %346 = vmatprep.subr.mxu0 0.0
  %347 = vmatpush1.msra.mxu0 %v97
  %348 = vmatprep.subr.mxu0 0.0
  %349 = vmatpush1.msra.mxu0 %v98
  %350 = vmatprep.subr.mxu0 0.0
  %351 = vmatpush1.msra.mxu0 %v99
  %352 = vmatprep.subr.mxu0 0.0
  %353 = vmatpush1.msra.mxu0 %v100
  %354 = vmatprep.subr.mxu0 0.0
  %355 = vmatpush1.msra.mxu0 %v101
  %356 = vmatprep.subr.mxu0 0.0
  %357 = vmatpush1.msra.mxu0 %v102
  %358 = vmatprep.subr.mxu0 0.0
  %359 = vmatpush1.msra.mxu0 %v103
  %360 = vmatprep.subr.mxu0 0.0
  %361 = vmatpush1.msra.mxu0 %v104
  %362 = vmatprep.subr.mxu0 0.0
  %363 = vmatpush1.msra.mxu0 %v105
  %364 = vmatprep.subr.mxu0 0.0
  %365 = vmatpush1.msra.mxu0 %v106
  %366 = vmatprep.subr.mxu0 0.0
  %367 = vmatpush1.msra.mxu0 %v107
  %368 = vmatprep.subr.mxu0 0.0
  %369 = vmatpush1.msra.mxu0 %v108
  %370 = vmatprep.subr.mxu0 0.0
  %371 = vmatpush1.msra.mxu0 %v109
  %372 = vmatprep.subr.mxu0 0.0
  %373 = vmatpush1.msra.mxu0 %v110
  %374 = vmatprep.subr.mxu0 0.0
  %375 = vmatpush1.msra.mxu0 %v111
  %376 = vmatprep.subr.mxu0 0.0
  %377 = vmatpush1.msra.mxu0 %v112
  %378 = vmatprep.subr.mxu0 0.0
  %379 = vmatpush1.msra.mxu0 %v113
  %380 = vmatprep.subr.mxu0 0.0
  %381 = vmatpush1.msra.mxu0 %v114
  %382 = vmatprep.subr.mxu0 0.0
  %383 = vmatpush1.msra.mxu0 %v115
  %384 = vmatprep.subr.mxu0 0.0
  %385 = vmatpush1.msra.mxu0 %v116
  %386 = vmatprep.subr.mxu0 0.0
  %387 = vmatpush1.msra.mxu0 %v117
  %388 = vmatprep.subr.mxu0 0.0
  %389 = vmatpush1.msra.mxu0 %v118
  %390 = vmatprep.subr.mxu0 0.0
  %391 = vmatpush1.msra.mxu0 %v119
  %392 = vmatprep.subr.mxu0 0.0
  %393 = vmatpush1.msra.mxu0 %v120
  %394 = vmatprep.subr.mxu0 0.0
  %395 = vmatpush1.msra.mxu0 %v121
  %396 = vmatprep.subr.mxu0 0.0
  %397 = vmatpush1.msra.mxu0 %v122
  %398 = vmatprep.subr.mxu0 0.0
  %399 = vmatpush1.msra.mxu0 %v123
  %400 = vmatprep.subr.mxu0 0.0
  %401 = vmatpush1.msra.mxu0 %v124
  %402 = vmatprep.subr.mxu0 0.0
  %403 = vmatpush1.msra.mxu0 %v125
  %404 = vmatprep.subr.mxu0 0.0
  %405 = vmatpush1.msra.mxu0 %v126
  %406 = vmatprep.subr.mxu0 0.0
  %407 = vmatpush1.msra.mxu0 %v127
  %408 = vmatprep.mubr.f32.mxu0 %v194
  %409 = vmatmul.mubr.f32.gmra.mrb[0].mxu0 %v186
  %v410 = vpop.f32.mrb[0].mxu0
  %v411 = vadd.f32 %v341, %v410
  %v412 = vpop.f32.mrb[0].mxu0
  %413 = vdwg.mxu0
  %414 = vmatprep.subr.mxu0 0.0
  %415 = vmatpush1.msra.mxu0 %v128
  %416 = vmatprep.subr.mxu0 0.0
  %417 = vmatpush1.msra.mxu0 %v129
  %418 = vmatprep.subr.mxu0 0.0
  %419 = vmatpush1.msra.mxu0 %v130
  %420 = vmatprep.subr.mxu0 0.0
  %421 = vmatpush1.msra.mxu0 %v131
  %422 = vmatprep.subr.mxu0 0.0
  %423 = vmatpush1.msra.mxu0 %v132
  %424 = vmatprep.subr.mxu0 0.0
  %425 = vmatpush1.msra.mxu0 %v133
  %426 = vmatprep.subr.mxu0 0.0
  %427 = vmatpush1.msra.mxu0 %v134
  %428 = vmatprep.subr.mxu0 0.0
  %429 = vmatpush1.msra.mxu0 %v135
  %430 = vmatprep.subr.mxu0 0.0
  %431 = vmatpush1.msra.mxu0 %v136
  %432 = vmatprep.subr.mxu0 0.0
  %433 = vmatpush1.msra.mxu0 %v137
  %434 = vmatprep.subr.mxu0 0.0
  %435 = vmatpush1.msra.mxu0 %v138
  %436 = vmatprep.subr.mxu0 0.0
  %437 = vmatpush1.msra.mxu0 %v139
  %438 = vmatprep.subr.mxu0 0.0
  %439 = vmatpush1.msra.mxu0 %v140
  %440 = vmatprep.subr.mxu0 0.0
  %441 = vmatpush1.msra.mxu0 %v141
  %442 = vmatprep.subr.mxu0 0.0
  %443 = vmatpush1.msra.mxu0 %v142
  %444 = vmatprep.subr.mxu0 0.0
  %445 = vmatpush1.msra.mxu0 %v143
  %446 = vmatprep.subr.mxu0 0.0
  %447 = vmatpush1.msra.mxu0 %v144
  %448 = vmatprep.subr.mxu0 0.0
  %449 = vmatpush1.msra.mxu0 %v145
  %450 = vmatprep.subr.mxu0 0.0
  %451 = vmatpush1.msra.mxu0 %v146
  %452 = vmatprep.subr.mxu0 0.0
  %453 = vmatpush1.msra.mxu0 %v147
  %454 = vmatprep.subr.mxu0 0.0
  %455 = vmatpush1.msra.mxu0 %v148
  %456 = vmatprep.subr.mxu0 0.0
  %457 = vmatpush1.msra.mxu0 %v149
  %458 = vmatprep.subr.mxu0 0.0
  %459 = vmatpush1.msra.mxu0 %v150
  %460 = vmatprep.subr.mxu0 0.0
  %461 = vmatpush1.msra.mxu0 %v151
  %462 = vmatprep.subr.mxu0 0.0
  %463 = vmatpush1.msra.mxu0 %v152
  %464 = vmatprep.subr.mxu0 0.0
  %465 = vmatpush1.msra.mxu0 %v153
  %466 = vmatprep.subr.mxu0 0.0
  %467 = vmatpush1.msra.mxu0 %v154
  %468 = vmatprep.subr.mxu0 0.0
  %469 = vmatpush1.msra.mxu0 %v155
  %470 = vmatprep.subr.mxu0 0.0
  %471 = vmatpush1.msra.mxu0 %v156
  %472 = vmatprep.subr.mxu0 0.0
  %473 = vmatpush1.msra.mxu0 %v157
  %474 = vmatprep.subr.mxu0 0.0
  %475 = vmatpush1.msra.mxu0 %v158
  %476 = vmatprep.subr.mxu0 0.0
  %477 = vmatpush1.msra.mxu0 %v159
  %478 = vmatprep.mubr.f32.mxu0 %v195
  %479 = vmatmul.mubr.f32.gmra.mrb[0].mxu0 %v193
  %v480 = vpop.f32.mrb[0].mxu0
  %v481 = vadd.f32 %v411, %v480
  %v482 = vpop.f32.mrb[0].mxu0
  %483 = vdwg.mxu0
  %v484 = vadd.f32 %v29, %v481
  %vm485 = vcmask 254976
  %486 = vst.msk [vmem:[#allocation2] sm:$0x3] %vm485, %v484
  // Predicated region
  $region30: #{tpu_custom_call.1} parent=0 // pred_check
    %p487 = pneg %p23
  $region31: #{tpu_custom_call.1} parent=0 // pred_check_branch
    %489 = sbr.rel (%p487) target = $region33
  $region32: #{tpu_custom_call.1} parent=0 // pred_region
    %v490 = vld [vmem:[%s2] sm:$0x1f]
    %v491 = vld [vmem:[#allocation2] sm:$0x3]
    %v492 = vlaneseq
    %v493 = vshrl.u32 %v492, 7
    %v494 = vsub.s32 0, %v493
    %v495 = vrot.slane %v490, %v494
    %v496 = vadd.f32 %v491, %v495
    %vm497 = vcmp.ge.f32.partialorder %v496, 0.0
    %v498 = vmul.f32 %v496, 0.2
    %v499 = vsel %vm497, %v496, %v498
    %v500 = vld [vmem:[%s3] sm:$0xff]
    %v501 = vld [vmem:[%s3 + $0x8] sm:$0xff]
    %v502 = vlaneseq
    %v503 = vshrl.u32 %v502, 7
    %v504 = vsub.s32 1, %v503
    %v505 = vrot.slane %v490, %v504
    %507 = vrot.lane.b32.xlu0 %v499, 112
    %v508 = vpop.permute.xlu0 %507
    %vm509 = vcmask 130048
    %v510 = vsel %vm509, %v508, 0
    %512 = vmatprep.subr.mxu0 0.0
    %513 = vmatpush1.msra.mxu0 %v500
    %514 = vmatprep.subr.mxu0 0.0
    %515 = vmatpush1.msra.mxu0 %v501
    %516 = vmatprep.subr.mxu0 0.0
    %517 = vmatpush1.msra.mxu0 0.0
    %518 = vmatprep.subr.mxu0 0.0
    %519 = vmatpush1.msra.mxu0 0.0
    %520 = vmatprep.subr.mxu0 0.0
    %521 = vmatpush1.msra.mxu0 0.0
    %522 = vmatprep.subr.mxu0 0.0
    %523 = vmatpush1.msra.mxu0 0.0
    %524 = vmatprep.subr.mxu0 0.0
    %525 = vmatpush1.msra.mxu0 0.0
    %526 = vmatprep.subr.mxu0 0.0
    %527 = vmatpush1.msra.mxu0 0.0
    %528 = vmatprep.subr.mxu0 0.0
    %529 = vmatpush1.msra.mxu0 0.0
    %530 = vmatprep.subr.mxu0 0.0
    %531 = vmatpush1.msra.mxu0 0.0
    %532 = vmatprep.subr.mxu0 0.0
    %533 = vmatpush1.msra.mxu0 0.0
    %534 = vmatprep.subr.mxu0 0.0
    %535 = vmatpush1.msra.mxu0 0.0
    %536 = vmatprep.subr.mxu0 0.0
    %537 = vmatpush1.msra.mxu0 0.0
    %538 = vmatprep.subr.mxu0 0.0
    %539 = vmatpush1.msra.mxu0 0.0
    %540 = vmatprep.subr.mxu0 0.0
    %541 = vmatpush1.msra.mxu0 0.0
    %542 = vmatprep.subr.mxu0 0.0
    %543 = vmatpush1.msra.mxu0 0.0
    %544 = vmatprep.subr.mxu0 0.0
    %545 = vmatpush1.msra.mxu0 0.0
    %546 = vmatprep.subr.mxu0 0.0
    %547 = vmatpush1.msra.mxu0 0.0
    %548 = vmatprep.subr.mxu0 0.0
    %549 = vmatpush1.msra.mxu0 0.0
    %550 = vmatprep.subr.mxu0 0.0
    %551 = vmatpush1.msra.mxu0 0.0
    %552 = vmatprep.subr.mxu0 0.0
    %553 = vmatpush1.msra.mxu0 0.0
    %554 = vmatprep.subr.mxu0 0.0
    %555 = vmatpush1.msra.mxu0 0.0
    %556 = vmatprep.subr.mxu0 0.0
    %557 = vmatpush1.msra.mxu0 0.0
    %558 = vmatprep.subr.mxu0 0.0
    %559 = vmatpush1.msra.mxu0 0.0
    %560 = vmatprep.subr.mxu0 0.0
    %561 = vmatpush1.msra.mxu0 0.0
    %562 = vmatprep.subr.mxu0 0.0
    %563 = vmatpush1.msra.mxu0 0.0
    %564 = vmatprep.subr.mxu0 0.0
    %565 = vmatpush1.msra.mxu0 0.0
    %566 = vmatprep.subr.mxu0 0.0
    %567 = vmatpush1.msra.mxu0 0.0
    %568 = vmatprep.subr.mxu0 0.0
    %569 = vmatpush1.msra.mxu0 0.0
    %570 = vmatprep.subr.mxu0 0.0
    %571 = vmatpush1.msra.mxu0 0.0
    %572 = vmatprep.subr.mxu0 0.0
    %573 = vmatpush1.msra.mxu0 0.0
    %574 = vmatprep.subr.mxu0 0.0
    %575 = vmatpush1.msra.mxu0 0.0
    %576 = vmatprep.mubr.f32.mxu0 0.0
    %577 = vmatmul.mubr.f32.gmra.mrb[0].mxu0 %v510
    %v578 = vpop.f32.mrb[0].mxu0
    %v579 = vadd.f32 %v505, %v578
    %v580 = vpop.f32.mrb[0].mxu0
    %581 = vdwg.mxu0
    %vm582 = vcmp.ge.f32.partialorder %v579, 0.0
    %v583 = vmul.f32 %v579, 0.2
    %v584 = vsel %vm582, %v579, %v583
    %s585 = scalar_lea.vmem %s3, 16
    %v586 = vld [vmem:[%s585] sm:$0xff]
    %v587 = vld [vmem:[%s585 + $0x8] sm:$0xff]
    %v588 = vlaneseq
    %v589 = vshrl.u32 %v588, 7
    %v590 = vsub.s32 2, %v589
    %v591 = vrot.slane %v490, %v590
    %v593 = vsel %vm509, %v584, 0
    %595 = vmatprep.subr.mxu0 0.0
    %596 = vmatpush1.msra.mxu0 %v586
    %597 = vmatprep.subr.mxu0 0.0
    %598 = vmatpush1.msra.mxu0 %v587
    %599 = vmatprep.subr.mxu0 0.0
    %600 = vmatpush1.msra.mxu0 0.0
    %601 = vmatprep.subr.mxu0 0.0
    %602 = vmatpush1.msra.mxu0 0.0
    %603 = vmatprep.subr.mxu0 0.0
    %604 = vmatpush1.msra.mxu0 0.0
    %605 = vmatprep.subr.mxu0 0.0
    %606 = vmatpush1.msra.mxu0 0.0
    %607 = vmatprep.subr.mxu0 0.0
    %608 = vmatpush1.msra.mxu0 0.0
    %609 = vmatprep.subr.mxu0 0.0
    %610 = vmatpush1.msra.mxu0 0.0
    %611 = vmatprep.subr.mxu0 0.0
    %612 = vmatpush1.msra.mxu0 0.0
    %613 = vmatprep.subr.mxu0 0.0
    %614 = vmatpush1.msra.mxu0 0.0
    %615 = vmatprep.subr.mxu0 0.0
    %616 = vmatpush1.msra.mxu0 0.0
    %617 = vmatprep.subr.mxu0 0.0
    %618 = vmatpush1.msra.mxu0 0.0
    %619 = vmatprep.subr.mxu0 0.0
    %620 = vmatpush1.msra.mxu0 0.0
    %621 = vmatprep.subr.mxu0 0.0
    %622 = vmatpush1.msra.mxu0 0.0
    %623 = vmatprep.subr.mxu0 0.0
    %624 = vmatpush1.msra.mxu0 0.0
    %625 = vmatprep.subr.mxu0 0.0
    %626 = vmatpush1.msra.mxu0 0.0
    %627 = vmatprep.subr.mxu0 0.0
    %628 = vmatpush1.msra.mxu0 0.0
    %629 = vmatprep.subr.mxu0 0.0
    %630 = vmatpush1.msra.mxu0 0.0
    %631 = vmatprep.subr.mxu0 0.0
    %632 = vmatpush1.msra.mxu0 0.0
    %633 = vmatprep.subr.mxu0 0.0
    %634 = vmatpush1.msra.mxu0 0.0
    %635 = vmatprep.subr.mxu0 0.0
    %636 = vmatpush1.msra.mxu0 0.0
    %637 = vmatprep.subr.mxu0 0.0
    %638 = vmatpush1.msra.mxu0 0.0
    %639 = vmatprep.subr.mxu0 0.0
    %640 = vmatpush1.msra.mxu0 0.0
    %641 = vmatprep.subr.mxu0 0.0
    %642 = vmatpush1.msra.mxu0 0.0
    %643 = vmatprep.subr.mxu0 0.0
    %644 = vmatpush1.msra.mxu0 0.0
    %645 = vmatprep.subr.mxu0 0.0
    %646 = vmatpush1.msra.mxu0 0.0
    %647 = vmatprep.subr.mxu0 0.0
    %648 = vmatpush1.msra.mxu0 0.0
    %649 = vmatprep.subr.mxu0 0.0
    %650 = vmatpush1.msra.mxu0 0.0
    %651 = vmatprep.subr.mxu0 0.0
    %652 = vmatpush1.msra.mxu0 0.0
    %653 = vmatprep.subr.mxu0 0.0
    %654 = vmatpush1.msra.mxu0 0.0
    %655 = vmatprep.subr.mxu0 0.0
    %656 = vmatpush1.msra.mxu0 0.0
    %657 = vmatprep.subr.mxu0 0.0
    %658 = vmatpush1.msra.mxu0 0.0
    %659 = vmatprep.mubr.f32.mxu0 0.0
    %660 = vmatmul.mubr.f32.gmra.mrb[0].mxu0 %v593
    %v661 = vpop.f32.mrb[0].mxu0
    %v662 = vadd.f32 %v591, %v661
    %v663 = vpop.f32.mrb[0].mxu0
    %664 = vdwg.mxu0
    %vm665 = vcmp.ge.f32.partialorder %v662, 0.0
    %v666 = vmul.f32 %v662, 0.2
    %v667 = vsel %vm665, %v662, %v666
    %s668 = scalar_lea.vmem %s3, 32
    %v669 = vld [vmem:[%s668] sm:$0xff]
    %v670 = vld [vmem:[%s668 + $0x8] sm:$0xff]
    %v671 = vlaneseq
    %v672 = vshrl.u32 %v671, 7
    %v673 = vsub.s32 3, %v672
    %v674 = vrot.slane %v490, %v673
    %v676 = vsel %vm509, %v667, 0
    %678 = vmatprep.subr.mxu0 0.0
    %679 = vmatpush1.msra.mxu0 %v669
    %680 = vmatprep.subr.mxu0 0.0
    %681 = vmatpush1.msra.mxu0 %v670
    %682 = vmatprep.subr.mxu0 0.0
    %683 = vmatpush1.msra.mxu0 0.0
    %684 = vmatprep.subr.mxu0 0.0
    %685 = vmatpush1.msra.mxu0 0.0
    %686 = vmatprep.subr.mxu0 0.0
    %687 = vmatpush1.msra.mxu0 0.0
    %688 = vmatprep.subr.mxu0 0.0
    %689 = vmatpush1.msra.mxu0 0.0
    %690 = vmatprep.subr.mxu0 0.0
    %691 = vmatpush1.msra.mxu0 0.0
    %692 = vmatprep.subr.mxu0 0.0
    %693 = vmatpush1.msra.mxu0 0.0
    %694 = vmatprep.subr.mxu0 0.0
    %695 = vmatpush1.msra.mxu0 0.0
    %696 = vmatprep.subr.mxu0 0.0
    %697 = vmatpush1.msra.mxu0 0.0
    %698 = vmatprep.subr.mxu0 0.0
    %699 = vmatpush1.msra.mxu0 0.0
    %700 = vmatprep.subr.mxu0 0.0
    %701 = vmatpush1.msra.mxu0 0.0
    %702 = vmatprep.subr.mxu0 0.0
    %703 = vmatpush1.msra.mxu0 0.0
    %704 = vmatprep.subr.mxu0 0.0
    %705 = vmatpush1.msra.mxu0 0.0
    %706 = vmatprep.subr.mxu0 0.0
    %707 = vmatpush1.msra.mxu0 0.0
    %708 = vmatprep.subr.mxu0 0.0
    %709 = vmatpush1.msra.mxu0 0.0
    %710 = vmatprep.subr.mxu0 0.0
    %711 = vmatpush1.msra.mxu0 0.0
    %712 = vmatprep.subr.mxu0 0.0
    %713 = vmatpush1.msra.mxu0 0.0
    %714 = vmatprep.subr.mxu0 0.0
    %715 = vmatpush1.msra.mxu0 0.0
    %716 = vmatprep.subr.mxu0 0.0
    %717 = vmatpush1.msra.mxu0 0.0
    %718 = vmatprep.subr.mxu0 0.0
    %719 = vmatpush1.msra.mxu0 0.0
    %720 = vmatprep.subr.mxu0 0.0
    %721 = vmatpush1.msra.mxu0 0.0
    %722 = vmatprep.subr.mxu0 0.0
    %723 = vmatpush1.msra.mxu0 0.0
    %724 = vmatprep.subr.mxu0 0.0
    %725 = vmatpush1.msra.mxu0 0.0
    %726 = vmatprep.subr.mxu0 0.0
    %727 = vmatpush1.msra.mxu0 0.0
    %728 = vmatprep.subr.mxu0 0.0
    %729 = vmatpush1.msra.mxu0 0.0
    %730 = vmatprep.subr.mxu0 0.0
    %731 = vmatpush1.msra.mxu0 0.0
    %732 = vmatprep.subr.mxu0 0.0
    %733 = vmatpush1.msra.mxu0 0.0
    %734 = vmatprep.subr.mxu0 0.0
    %735 = vmatpush1.msra.mxu0 0.0
    %736 = vmatprep.subr.mxu0 0.0
    %737 = vmatpush1.msra.mxu0 0.0
    %738 = vmatprep.subr.mxu0 0.0
    %739 = vmatpush1.msra.mxu0 0.0
    %740 = vmatprep.subr.mxu0 0.0
    %741 = vmatpush1.msra.mxu0 0.0
    %742 = vmatprep.mubr.f32.mxu0 0.0
    %743 = vmatmul.mubr.f32.gmra.mrb[0].mxu0 %v676
    %v744 = vpop.f32.mrb[0].mxu0
    %v745 = vadd.f32 %v674, %v744
    %v746 = vpop.f32.mrb[0].mxu0
    %747 = vdwg.mxu0
    %vm748 = vcmp.ge.f32.partialorder %v745, 0.0
    %v749 = vmul.f32 %v745, 0.2
    %v750 = vsel %vm748, %v745, %v749
    %751 = vrot.lane.b32.xlu0 %v584, 16
    %v752 = vpop.permute.xlu0 %751
    %754 = vrot.lane.b32.xlu0 %v667, 32
    %v755 = vpop.permute.xlu0 %754
    %758 = vrot.lane.b32.xlu0 %v750, 48
    %v759 = vpop.permute.xlu0 %758
    %v761 = vsel %vm509, %v499, %v752
    %vm762 = vcmask 261120
    %v763 = vsel %vm762, %v761, %v755
    %vm764 = vcmask 392192
    %v765 = vsel %vm764, %v763, %v759
    %v766 = vld [vmem:[%s4] sm:$0xff]
    %v767 = vld [vmem:[%s4 + $0x8] sm:$0xff]
    %v768 = vld [vmem:[%s4 + $0x10] sm:$0xff]
    %v769 = vld [vmem:[%s4 + $0x18] sm:$0xff]
    %v770 = vld [vmem:[%s4 + $0x20] sm:$0xff]
    %v771 = vld [vmem:[%s4 + $0x28] sm:$0xff]
    %v772 = vld [vmem:[%s4 + $0x30] sm:$0xff]
    %v773 = vld [vmem:[%s4 + $0x38] sm:$0xff]
    %v774 = vlaneseq
    %v775 = vshrl.u32 %v774, 7
    %v776 = vsub.s32 4, %v775
    %v777 = vrot.slane %v490, %v776
    %vm778 = vcmask 523264
    %v780 = vsel %vm778, %v765, 0
    %782 = vmatprep.subr.mxu0 0.0
    %783 = vmatpush1.msra.mxu0 %v766
    %784 = vmatprep.subr.mxu0 0.0
    %785 = vmatpush1.msra.mxu0 %v767
    %786 = vmatprep.subr.mxu0 0.0
    %787 = vmatpush1.msra.mxu0 %v768
    %788 = vmatprep.subr.mxu0 0.0
    %789 = vmatpush1.msra.mxu0 %v769
    %790 = vmatprep.subr.mxu0 0.0
    %791 = vmatpush1.msra.mxu0 %v770
    %792 = vmatprep.subr.mxu0 0.0
    %793 = vmatpush1.msra.mxu0 %v771
    %794 = vmatprep.subr.mxu0 0.0
    %795 = vmatpush1.msra.mxu0 %v772
    %796 = vmatprep.subr.mxu0 0.0
    %797 = vmatpush1.msra.mxu0 %v773
    %798 = vmatprep.subr.mxu0 0.0
    %799 = vmatpush1.msra.mxu0 0.0
    %800 = vmatprep.subr.mxu0 0.0
    %801 = vmatpush1.msra.mxu0 0.0
    %802 = vmatprep.subr.mxu0 0.0
    %803 = vmatpush1.msra.mxu0 0.0
    %804 = vmatprep.subr.mxu0 0.0
    %805 = vmatpush1.msra.mxu0 0.0
    %806 = vmatprep.subr.mxu0 0.0
    %807 = vmatpush1.msra.mxu0 0.0
    %808 = vmatprep.subr.mxu0 0.0
    %809 = vmatpush1.msra.mxu0 0.0
    %810 = vmatprep.subr.mxu0 0.0
    %811 = vmatpush1.msra.mxu0 0.0
    %812 = vmatprep.subr.mxu0 0.0
    %813 = vmatpush1.msra.mxu0 0.0
    %814 = vmatprep.subr.mxu0 0.0
    %815 = vmatpush1.msra.mxu0 0.0
    %816 = vmatprep.subr.mxu0 0.0
    %817 = vmatpush1.msra.mxu0 0.0
    %818 = vmatprep.subr.mxu0 0.0
    %819 = vmatpush1.msra.mxu0 0.0
    %820 = vmatprep.subr.mxu0 0.0
    %821 = vmatpush1.msra.mxu0 0.0
    %822 = vmatprep.subr.mxu0 0.0
    %823 = vmatpush1.msra.mxu0 0.0
    %824 = vmatprep.subr.mxu0 0.0
    %825 = vmatpush1.msra.mxu0 0.0
    %826 = vmatprep.subr.mxu0 0.0
    %827 = vmatpush1.msra.mxu0 0.0
    %828 = vmatprep.subr.mxu0 0.0
    %829 = vmatpush1.msra.mxu0 0.0
    %830 = vmatprep.subr.mxu0 0.0
    %831 = vmatpush1.msra.mxu0 0.0
    %832 = vmatprep.subr.mxu0 0.0
    %833 = vmatpush1.msra.mxu0 0.0
    %834 = vmatprep.subr.mxu0 0.0
    %835 = vmatpush1.msra.mxu0 0.0
    %836 = vmatprep.subr.mxu0 0.0
    %837 = vmatpush1.msra.mxu0 0.0
    %838 = vmatprep.subr.mxu0 0.0
    %839 = vmatpush1.msra.mxu0 0.0
    %840 = vmatprep.subr.mxu0 0.0
    %841 = vmatpush1.msra.mxu0 0.0
    %842 = vmatprep.subr.mxu0 0.0
    %843 = vmatpush1.msra.mxu0 0.0
    %844 = vmatprep.subr.mxu0 0.0
    %845 = vmatpush1.msra.mxu0 0.0
    %846 = vmatprep.mubr.f32.mxu0 0.0
    %847 = vmatmul.mubr.f32.gmra.mrb[0].mxu0 %v780
    %v848 = vpop.f32.mrb[0].mxu0
    %v849 = vadd.f32 %v777, %v848
    %v850 = vpop.f32.mrb[0].mxu0
    %851 = vdwg.mxu0
    %vm852 = vcmp.ge.f32.partialorder %v849, 0.0
    %v853 = vmul.f32 %v849, 0.2
    %v854 = vsel %vm852, %v849, %v853
    %v855 = vld [vmem:[%s5] sm:$0xff]
    %v856 = vld [vmem:[%s5 + $0x8] sm:$0xff]
    %v858 = vsel %vm509, %v854, 0
    %860 = vmatprep.subr.mxu0 0.0
    %861 = vmatpush1.msra.mxu0 %v855
    %862 = vmatprep.subr.mxu0 0.0
    %863 = vmatpush1.msra.mxu0 %v856
    %864 = vmatprep.subr.mxu0 0.0
    %865 = vmatpush1.msra.mxu0 0.0
    %866 = vmatprep.subr.mxu0 0.0
    %867 = vmatpush1.msra.mxu0 0.0
    %868 = vmatprep.subr.mxu0 0.0
    %869 = vmatpush1.msra.mxu0 0.0
    %870 = vmatprep.subr.mxu0 0.0
    %871 = vmatpush1.msra.mxu0 0.0
    %872 = vmatprep.subr.mxu0 0.0
    %873 = vmatpush1.msra.mxu0 0.0
    %874 = vmatprep.subr.mxu0 0.0
    %875 = vmatpush1.msra.mxu0 0.0
    %876 = vmatprep.subr.mxu0 0.0
    %877 = vmatpush1.msra.mxu0 0.0
    %878 = vmatprep.subr.mxu0 0.0
    %879 = vmatpush1.msra.mxu0 0.0
    %880 = vmatprep.subr.mxu0 0.0
    %881 = vmatpush1.msra.mxu0 0.0
    %882 = vmatprep.subr.mxu0 0.0
    %883 = vmatpush1.msra.mxu0 0.0
    %884 = vmatprep.subr.mxu0 0.0
    %885 = vmatpush1.msra.mxu0 0.0
    %886 = vmatprep.subr.mxu0 0.0
    %887 = vmatpush1.msra.mxu0 0.0
    %888 = vmatprep.subr.mxu0 0.0
    %889 = vmatpush1.msra.mxu0 0.0
    %890 = vmatprep.subr.mxu0 0.0
    %891 = vmatpush1.msra.mxu0 0.0
    %892 = vmatprep.subr.mxu0 0.0
    %893 = vmatpush1.msra.mxu0 0.0
    %894 = vmatprep.subr.mxu0 0.0
    %895 = vmatpush1.msra.mxu0 0.0
    %896 = vmatprep.subr.mxu0 0.0
    %897 = vmatpush1.msra.mxu0 0.0
    %898 = vmatprep.subr.mxu0 0.0
    %899 = vmatpush1.msra.mxu0 0.0
    %900 = vmatprep.subr.mxu0 0.0
    %901 = vmatpush1.msra.mxu0 0.0
    %902 = vmatprep.subr.mxu0 0.0
    %903 = vmatpush1.msra.mxu0 0.0
    %904 = vmatprep.subr.mxu0 0.0
    %905 = vmatpush1.msra.mxu0 0.0
    %906 = vmatprep.subr.mxu0 0.0
    %907 = vmatpush1.msra.mxu0 0.0
    %908 = vmatprep.subr.mxu0 0.0
    %909 = vmatpush1.msra.mxu0 0.0
    %910 = vmatprep.subr.mxu0 0.0
    %911 = vmatpush1.msra.mxu0 0.0
    %912 = vmatprep.subr.mxu0 0.0
    %913 = vmatpush1.msra.mxu0 0.0
    %914 = vmatprep.subr.mxu0 0.0
    %915 = vmatpush1.msra.mxu0 0.0
    %916 = vmatprep.subr.mxu0 0.0
    %917 = vmatpush1.msra.mxu0 0.0
    %918 = vmatprep.subr.mxu0 0.0
    %919 = vmatpush1.msra.mxu0 0.0
    %920 = vmatprep.subr.mxu0 0.0
    %921 = vmatpush1.msra.mxu0 0.0
    %922 = vmatprep.subr.mxu0 0.0
    %923 = vmatpush1.msra.mxu0 0.0
    %924 = vmatprep.mubr.f32.mxu0 0.0
    %925 = vmatmul.mubr.f32.gmra.mrb[0].mxu0 %v858
    %v926 = vpop.f32.mrb[0].mxu0
    %v927 = vadd.f32 0.0, %v926
    %v928 = vpop.f32.mrb[0].mxu0
    %929 = vdwg.mxu0
    %vm930 = vcmask 1024
    %931 = vst.msk [vmem:[%s6] sm:$0x3] %vm930, %v927
  $region33: #{tpu_custom_call.1} parent=0 // pred_fallthru
    _
  // Predicated region
  $region34: #{tpu_custom_call.1} parent=0 // pred_check
    _
  $region35: #{tpu_custom_call.1} parent=0 // pred_check_branch
    %933 = sbr.rel (0) target = $region37
  $region36: #{tpu_custom_call.1} parent=0 // pred_region
    _
  $region37: #{tpu_custom_call.1} parent=0 // pred_fallthru
    _
  // Predicated region
  $region38: #{tpu_custom_call.1} parent=0 // pred_check
    _
  $region39: #{tpu_custom_call.1} parent=0 // pred_check_branch
    %935 = sbr.rel (0) target = $region41
  $region40: #{tpu_custom_call.1} parent=0 // pred_region
    _
  $region41: #{tpu_custom_call.1} parent=0 // pred_fallthru
    _

</llo_original>
